<compile_context>
chip_gen: v7x
topology: tpu7x:2x2x1
jax: 0.10.0
libtpu: 0.0.40
codegen_flags: <defaults>
</compile_context>

<pallas_src>
import itertools
import math

import jax
import jax.numpy as jnp
from jax import lax
from jax.experimental import pallas as pl
from jax.experimental.pallas import tpu as pltpu

EPS = 1e-12  # torch.nn.functional.normalize default eps


def _round_up(x, m):
    return -(-x // m) * m


# ------------------------------ fused kernel -------------------------------
#
# Grid: (row_tiles, hw_tiles)
#   axis 0 ("parallel"):  TM-row tiles of the concatenated multi-crop batch
#   axis 1 ("arbitrary"): streamed reduction over the (padded) h*w axis

def _fused_kernel(x_ref, scale_ref, w_enc_ref, b_enc_ref, w1_ref, b1_ref,
                  w2_ref, b2_ref, wp_ref, logits_ref, z_ref, pooled_acc):
    k = pl.program_id(1)

    @pl.when(k == 0)
    def _():
        pooled_acc[...] = jnp.zeros_like(pooled_acc)

    # streamed global-average-pool partial sum (XLU cross-lane reduce)
    pooled_acc[...] += jnp.sum(x_ref[...], axis=-1)

    @pl.when(k == pl.num_programs(1) - 1)
    def _():
        # finish GAP: per-row 1/hw scale (padded batch rows carry scale 0)
        pooled = pooled_acc[...] * scale_ref[...]

        # bf16 MXU operands, f32 accumulation; elementwise stays f32.
        def mxu(a, w_ref):
            return jnp.dot(a.astype(jnp.bfloat16), w_ref[...],
                           preferred_element_type=jnp.float32)

        # synthetic encoder: Linear + ReLU
        h = jnp.maximum(mxu(pooled, w_enc_ref) + b_enc_ref[...], 0.0)

        # projector MLP (use_bn=False): Linear -> ReLU -> Linear; output
        # weights are zero-padded to 128 lanes -> lane-dense z, pad lanes == 0
        h1 = jnp.maximum(mxu(h, w1_ref) + b1_ref[...], 0.0)
        z = mxu(h1, w2_ref) + b2_ref[...]

        # row-wise L2 normalize (F.normalize dim=1) via rsqrt (EUP slot)
        sumsq = jnp.sum(z * z, axis=-1, keepdims=True)
        z_n = z * lax.rsqrt(jnp.maximum(sumsq, EPS * EPS))
        z_ref[...] = z_n

        # prototype head: weights arrive pre-normalized (hoisted to wrapper),
        # pre-transposed and zero-row padded as bf16 (128, K) -> pure MXU push.
        # TODO(synk): for n_prototypes >> 128 pad/tile K to multiples of 256
        #             (v6e/v7x MXU output width) and add a K grid axis.
        logits_ref[...] = mxu(z_n, wp_ref)


# ------------------------------ model wrapper ------------------------------

class DeepClusterPallas:
    """DeepCluster forward as a single fused, row-tiled Pallas TPU kernel.

    TODO(synk): the encoder passed to DeepCluster is arbitrary in the
                reference; a synthetic GAP + Linear + ReLU encoder is used.
    TODO(synk): MLPHead with use_bn=True (BatchNorm1d) is not implemented.
    TODO(synk): MultiPrototypes (list-valued n_prototypes) is not implemented.
    """

    def __init__(self, key, *, in_channels=4, encoder_dim=32, feature_dim=16,
                 hidden_dim=64, n_prototypes=128):
        keys = jax.random.split(key, 7)

        def unif(k, shape, fan_in):
            bound = 1.0 / math.sqrt(fan_in)
            return jax.random.uniform(k, shape, jnp.float32, -bound, bound)

        # f32 master parameters
        self.w_enc = unif(keys[0], (in_channels, encoder_dim), in_channels)
        self.b_enc = unif(keys[1], (1, encoder_dim), in_channels)
        self.w1 = unif(keys[2], (encoder_dim, hidden_dim), encoder_dim)
        self.b1 = unif(keys[3], (1, hidden_dim), encoder_dim)
        self.w2 = unif(keys[4], (hidden_dim, feature_dim), hidden_dim)
        self.b2 = unif(keys[5], (1, feature_dim), hidden_dim)
        # prototypes: nn.Linear(feature_dim, n_prototypes, bias=False),
        # stored PyTorch-style as (n_prototypes, feature_dim)
        self.w_proto = unif(keys[6], (n_prototypes, feature_dim), feature_dim)

        self.in_channels = in_channels
        self.encoder_dim = encoder_dim
        self.feature_dim = feature_dim
        self.n_prototypes = n_prototypes

        # --- one-time layout plumbing: bf16 MXU weight copies; biases stay
        #     f32 (added after f32 accumulation); projector output zero-padded
        #     to 128 lanes for lane-dense stores ---
        self.lane_pad = _round_up(feature_dim, 128)
        self.w_enc_bf = self.w_enc.astype(jnp.bfloat16)
        self.w1_bf = self.w1.astype(jnp.bfloat16)
        self.w2_pad_bf = (jnp.zeros((hidden_dim, self.lane_pad), jnp.float32)
                          .at[:, :feature_dim].set(self.w2)
                          .astype(jnp.bfloat16))
        self.b2_pad = (jnp.zeros((1, self.lane_pad), jnp.float32)
                       .at[:, :feature_dim].set(self.b2))

    # --- forward, mirroring DeepCluster.forward multi-crop handling ---
    def forward(self, inputs):
        if not isinstance(inputs, (list, tuple)):
            inputs = [inputs]

        # torch.unique_consecutive(..., return_counts=True)[1] -> cumsum,
        # computed statically from the (static) last spatial dims.
        sizes = [int(inp.shape[-1]) for inp in inputs]
        counts, last = [], None
        for s in sizes:
            if counts and s == last:
                counts[-1] += 1
            else:
                counts.append(1)
            last = s
        idx_crops = list(itertools.accumulate(counts))

        # Same concat semantics as torch.cat over same-resolution crops; then
        # merge everything into ONE homogeneous (N_pad, C, HW_pad) batch with
        # a per-row 1/hw scale so the kernel's streamed sum is the exact mean.
        groups, scales, start = [], [], 0
        for end in idx_crops:
            batch = jnp.concatenate(inputs[start:end], axis=0)
            n, c, hh, ww = batch.shape
            groups.append(batch.reshape(n, c, hh * ww))
            scales.append(jnp.full((n, 1), 1.0 / float(hh * ww), jnp.float32))
            start = end

        c = groups[0].shape[1]
        hw_max = max(g.shape[2] for g in groups)
        thw = 128                      # hw streaming tile (raise for real crops)
        hw_pad = _round_up(hw_max, thw)
        n_total = sum(g.shape[0] for g in groups)
        tm = 128 if n_total >= 128 else _round_up(n_total, 8)
        n_pad = _round_up(n_total, tm)

        # TODO(synk): zero-padding small crops to the largest hw wastes HBM
        #             bandwidth when resolutions differ a lot; production
        #             multi-crop would launch one kernel per resolution group.
        x_all = jnp.concatenate(
            [jnp.pad(g, ((0, 0), (0, 0), (0, hw_pad - g.shape[2])))
             for g in groups], axis=0)
        scale = jnp.concatenate(scales, axis=0)
        if n_pad > n_total:
            x_all = jnp.pad(x_all, ((0, n_pad - n_total), (0, 0), (0, 0)))
            scale = jnp.pad(scale, ((0, n_pad - n_total), (0, 0)))

        # Prototype-weight normalization hoisted out of the kernel
        # (batch-invariant); write back to the f32 master to mirror torch's
        # prototypes.weight.copy_(normalized) persistence.
        norm = jnp.sqrt(jnp.sum(self.w_proto * self.w_proto, axis=1,
                                keepdims=True))
        w_proto_n = self.w_proto / jnp.maximum(norm, EPS)
        self.w_proto = w_proto_n
        wp_t_pad_bf = (jnp.zeros((self.lane_pad, self.n_prototypes),
                                 jnp.float32)
                       .at[:self.feature_dim, :].set(w_proto_n.T)
                       .astype(jnp.bfloat16))

        # full-array weight blocks with constant index maps (fetched once)
        def full_block(arr):
            return pl.BlockSpec(arr.shape, lambda i, k, nd=arr.ndim: (0,) * nd)

        in_specs = [
            pl.BlockSpec((tm, c, thw), lambda i, k: (i, 0, k)),   # images
            pl.BlockSpec((tm, 1), lambda i, k: (i, 0)),           # 1/hw scale
            full_block(self.w_enc_bf), full_block(self.b_enc),
            full_block(self.w1_bf), full_block(self.b1),
            full_block(self.w2_pad_bf), full_block(self.b2_pad),
            full_block(wp_t_pad_bf),
        ]
        out_specs = (
            pl.BlockSpec((tm, self.n_prototypes), lambda i, k: (i, 0)),
            pl.BlockSpec((tm, self.lane_pad), lambda i, k: (i, 0)),
        )
        out_shape = (
            jax.ShapeDtypeStruct((n_pad, self.n_prototypes), jnp.float32),
            jax.ShapeDtypeStruct((n_pad, self.lane_pad), jnp.float32),
        )

        # explicit VMEM budget: double-buffered blocks + weights + scratch,
        # clamped well under v7x's 64 MiB physical VMEM.
        def nbytes(a):
            return a.size * a.dtype.itemsize
        weight_bytes = sum(nbytes(a) for a in (
            self.w_enc_bf, self.b_enc, self.w1_bf, self.b1,
            self.w2_pad_bf, self.b2_pad, wp_t_pad_bf))
        block_bytes = (tm * c * thw * 4 + tm * 4
                       + tm * self.n_prototypes * 4 + tm * self.lane_pad * 4)
        vmem_limit = 2 * 2 * (block_bytes + weight_bytes) + tm * c * 4
        vmem_limit = min(max(int(vmem_limit), 16 * 1024 * 1024),
                         48 * 1024 * 1024)

        grid = (n_pad // tm, hw_pad // thw)
        logits_pad, z_pad = pl.pallas_call(
            _fused_kernel,
            out_shape=out_shape,
            grid_spec=pltpu.PrefetchScalarGridSpec(
                num_scalar_prefetch=0,
                grid=grid,
                in_specs=in_specs,
                out_specs=out_specs,
                scratch_shapes=[pltpu.VMEM((tm, c), jnp.float32)]),
            compiler_params=pltpu.CompilerParams(
                dimension_semantics=("parallel", "arbitrary"),
                vmem_limit_bytes=vmem_limit),
        )(x_all, scale, self.w_enc_bf, self.b_enc, self.w1_bf, self.b1,
          self.w2_pad_bf, self.b2_pad, wp_t_pad_bf)

        logits = logits_pad[:n_total]
        z = z_pad[:n_total, :self.feature_dim]
        return logits, z


# --------------------------- reference (pure jnp) ---------------------------

def _reference(model, inputs):
    # matches the kernel's mixed precision: bf16 MXU operands, f32 accumulate
    def bdot(a, b):
        return jnp.dot(a.astype(jnp.bfloat16), b.astype(jnp.bfloat16),
                       preferred_element_type=jnp.float32)

    pooled = jnp.concatenate(
        [jnp.mean(x.reshape(x.shape[0], x.shape[1], -1), axis=-1)
         for x in inputs], axis=0)
    h = jnp.maximum(bdot(pooled, model.w_enc) + model.b_enc, 0.0)
    h1 = jnp.maximum(bdot(h, model.w1) + model.b1, 0.0)
    z = bdot(h1, model.w2) + model.b2
    z = z / jnp.maximum(jnp.linalg.norm(z, axis=1, keepdims=True), EPS)
    wn = model.w_proto / jnp.maximum(
        jnp.linalg.norm(model.w_proto, axis=1, keepdims=True), EPS)
    return bdot(z, wn.T), z


# ----------------------------------- main -----------------------------------

if __name__ == "__main__":
    key = jax.random.PRNGKey(0)
    k_model, k1, k2, k3 = jax.random.split(key, 4)

    model = DeepClusterPallas(k_model, in_channels=4, encoder_dim=32,
                              feature_dim=16, hidden_dim=64, n_prototypes=128)

    # multi-crop inputs (NCHW): two 16x16 crops + one 8x8 crop, batch=2 each
    x_big1 = jax.random.normal(k1, (2, 4, 16, 16), jnp.float32)
    x_big2 = jax.random.normal(k2, (2, 4, 16, 16), jnp.float32)
    x_small = jax.random.normal(k3, (2, 4, 8, 8), jnp.float32)
    inputs = [x_big1, x_big2, x_small]

    output, z = model.forward(inputs)
    output = jax.block_until_ready(output)
    z = jax.block_until_ready(z)

    assert output.shape == (6, 128) and z.shape == (6, 16)

    ref_out, ref_z = _reference(model, inputs)
    # bf16 MXU operands in both kernel and reference -> modest tolerance
    assert jnp.allclose(output, ref_out, atol=1e-3, rtol=1e-3), \
        float(jnp.max(jnp.abs(output - ref_out)))
    assert jnp.allclose(z, ref_z, atol=1e-3, rtol=1e-3), \
        float(jnp.max(jnp.abs(z - ref_z)))

    print("KERNEL_OK")
</pallas_src>

<mosaic_0001>
module attributes {stable_mosaic.version = 11 : i64} {
  func.func @_fused_kernel(%arg0: i32, %arg1: i32, %arg2: memref<8x4x128xf32, #tpu.memory_space<vmem>>, %arg3: memref<8x1xf32, #tpu.memory_space<vmem>>, %arg4: memref<4x32xbf16, #tpu.memory_space<vmem>>, %arg5: memref<1x32xf32, #tpu.memory_space<vmem>>, %arg6: memref<32x64xbf16, #tpu.memory_space<vmem>>, %arg7: memref<1x64xf32, #tpu.memory_space<vmem>>, %arg8: memref<64x128xbf16, #tpu.memory_space<vmem>>, %arg9: memref<1x128xf32, #tpu.memory_space<vmem>>, %arg10: memref<128x128xbf16, #tpu.memory_space<vmem>>, %arg11: memref<8x128xf32, #tpu.memory_space<vmem>>, %arg12: memref<8x128xf32, #tpu.memory_space<vmem>>, %arg13: memref<8x4xf32, #tpu.memory_space<vmem>>) attributes {dimension_semantics = [#tpu.dimension_semantics<parallel>, #tpu.dimension_semantics<arbitrary>], iteration_bounds = array<i64: 1, 2>, scalar_prefetch = 0 : i64, scratch_operands = 1 : i64, tpu.core_type = #tpu.core_type<tc>, window_params = [{transform_indices = @transform_0, window_bounds = array<i64: 8, 4, 128>}, {transform_indices = @transform_1, window_bounds = array<i64: 8, 1>}, {pipeline_mode = #tpu.pipeline_mode<synchronous>, transform_indices = @transform_2, window_bounds = array<i64: 4, 32>}, {pipeline_mode = #tpu.pipeline_mode<synchronous>, transform_indices = @transform_3, window_bounds = array<i64: 1, 32>}, {pipeline_mode = #tpu.pipeline_mode<synchronous>, transform_indices = @transform_4, window_bounds = array<i64: 32, 64>}, {pipeline_mode = #tpu.pipeline_mode<synchronous>, transform_indices = @transform_5, window_bounds = array<i64: 1, 64>}, {pipeline_mode = #tpu.pipeline_mode<synchronous>, transform_indices = @transform_6, window_bounds = array<i64: 64, 128>}, {pipeline_mode = #tpu.pipeline_mode<synchronous>, transform_indices = @transform_7, window_bounds = array<i64: 1, 128>}, {pipeline_mode = #tpu.pipeline_mode<synchronous>, transform_indices = @transform_8, window_bounds = array<i64: 128, 128>}, {transform_indices = @transform_9, window_bounds = array<i64: 8, 128>}, {transform_indices = @transform_10, window_bounds = array<i64: 8, 128>}]} {
    %c0_i32 = arith.constant 0 : i32
    %0 = arith.cmpi eq, %arg1, %c0_i32 : i32
    %1 = arith.extui %0 : i1 to i32
    %c0_i32_0 = arith.constant 0 : i32
    %2 = arith.cmpi ne, %1, %c0_i32_0 : i32
    scf.if %2 {
      %cst_8 = arith.constant 0.000000e+00 : f32
      %11 = vector.broadcast %cst_8 : f32 to vector<8x4xf32>
      %c0_9 = arith.constant 0 : index
      %c0_10 = arith.constant 0 : index
      %12 = vector.load %arg13[%c0_9, %c0_10] : memref<8x4xf32, #tpu.memory_space<vmem>>, vector<8x4xf32>
      tpu.vector_store %arg13[%c0_9, %c0_10], %11 {strides = array<i32>} : memref<8x4xf32, #tpu.memory_space<vmem>>, vector<8x4xf32>,
    } else {
    }
    %c0 = arith.constant 0 : index
    %c0_1 = arith.constant 0 : index
    %3 = vector.load %arg13[%c0, %c0_1] : memref<8x4xf32, #tpu.memory_space<vmem>>, vector<8x4xf32>
    %c0_2 = arith.constant 0 : index
    %c0_3 = arith.constant 0 : index
    %c0_4 = arith.constant 0 : index
    %4 = vector.load %arg2[%c0_2, %c0_3, %c0_4] : memref<8x4x128xf32, #tpu.memory_space<vmem>>, vector<8x4x128xf32>
    %cst = arith.constant dense<0.000000e+00> : vector<8x4xf32>
    %5 = vector.multi_reduction <add>, %4, %cst [2] : vector<8x4x128xf32> to vector<8x4xf32>
    %6 = arith.addf %3, %5 : vector<8x4xf32>
    %c0_5 = arith.constant 0 : index
    %c0_6 = arith.constant 0 : index
    %7 = vector.load %arg13[%c0_5, %c0_6] : memref<8x4xf32, #tpu.memory_space<vmem>>, vector<8x4xf32>
    tpu.vector_store %arg13[%c0_5, %c0_6], %6 {strides = array<i32>} : memref<8x4xf32, #tpu.memory_space<vmem>>, vector<8x4xf32>,
    %c1_i32 = arith.constant 1 : i32
    %8 = arith.cmpi eq, %arg1, %c1_i32 : i32
    %9 = arith.extui %8 : i1 to i32
    %c0_i32_7 = arith.constant 0 : i32
    %10 = arith.cmpi ne, %9, %c0_i32_7 : i32
    scf.if %10 {
      %c0_8 = arith.constant 0 : index
      %c0_9 = arith.constant 0 : index
      %11 = vector.load %arg13[%c0_8, %c0_9] : memref<8x4xf32, #tpu.memory_space<vmem>>, vector<8x4xf32>
      %c0_10 = arith.constant 0 : index
      %c0_11 = arith.constant 0 : index
      %12 = vector.load %arg3[%c0_10, %c0_11] : memref<8x1xf32, #tpu.memory_space<vmem>>, vector<8x1xf32>
      %13 = vector.broadcast %12 : vector<8x1xf32> to vector<8x4xf32>
      %14 = arith.mulf %11, %13 : vector<8x4xf32>
      %15 = arith.truncf %14 : vector<8x4xf32> to vector<8x4xbf16>
      %c0_12 = arith.constant 0 : index
      %c0_13 = arith.constant 0 : index
      %16 = vector.load %arg4[%c0_12, %c0_13] : memref<4x32xbf16, #tpu.memory_space<vmem>>, vector<4x32xbf16>
      %cst_14 = arith.constant dense<0.000000e+00> : vector<8x32xf32>
      %17 = tpu.matmul %15, %16, %cst_14 {dimension_numbers = #tpu.dot_dimension_numbers<[1], [0], [0], [1], [0, 0, 1, 1], [], []>} : vector<8x4xbf16>, vector<4x32xbf16>, vector<8x32xf32> -> vector<8x32xf32>
      %c0_15 = arith.constant 0 : index
      %c0_16 = arith.constant 0 : index
      %18 = vector.load %arg5[%c0_15, %c0_16] : memref<1x32xf32, #tpu.memory_space<vmem>>, vector<1x32xf32>
      %19 = vector.broadcast %18 : vector<1x32xf32> to vector<8x32xf32>
      %20 = arith.addf %17, %19 : vector<8x32xf32>
      %cst_17 = arith.constant 0.000000e+00 : f32
      %21 = vector.broadcast %cst_17 : f32 to vector<8x32xf32>
      %22 = arith.maximumf %20, %21 : vector<8x32xf32>
      %23 = arith.truncf %22 : vector<8x32xf32> to vector<8x32xbf16>
      %c0_18 = arith.constant 0 : index
      %c0_19 = arith.constant 0 : index
      %24 = vector.load %arg6[%c0_18, %c0_19] : memref<32x64xbf16, #tpu.memory_space<vmem>>, vector<32x64xbf16>
      %cst_20 = arith.constant dense<0.000000e+00> : vector<8x64xf32>
      %25 = tpu.matmul %23, %24, %cst_20 {dimension_numbers = #tpu.dot_dimension_numbers<[1], [0], [0], [1], [0, 0, 1, 1], [], []>} : vector<8x32xbf16>, vector<32x64xbf16>, vector<8x64xf32> -> vector<8x64xf32>
      %c0_21 = arith.constant 0 : index
      %c0_22 = arith.constant 0 : index
      %26 = vector.load %arg7[%c0_21, %c0_22] : memref<1x64xf32, #tpu.memory_space<vmem>>, vector<1x64xf32>
      %27 = vector.broadcast %26 : vector<1x64xf32> to vector<8x64xf32>
      %28 = arith.addf %25, %27 : vector<8x64xf32>
      %cst_23 = arith.constant 0.000000e+00 : f32
      %29 = vector.broadcast %cst_23 : f32 to vector<8x64xf32>
      %30 = arith.maximumf %28, %29 : vector<8x64xf32>
      %31 = arith.truncf %30 : vector<8x64xf32> to vector<8x64xbf16>
      %c0_24 = arith.constant 0 : index
      %c0_25 = arith.constant 0 : index
      %32 = vector.load %arg8[%c0_24, %c0_25] : memref<64x128xbf16, #tpu.memory_space<vmem>>, vector<64x128xbf16>
      %cst_26 = arith.constant dense<0.000000e+00> : vector<8x128xf32>
      %33 = tpu.matmul %31, %32, %cst_26 {dimension_numbers = #tpu.dot_dimension_numbers<[1], [0], [0], [1], [0, 0, 1, 1], [], []>} : vector<8x64xbf16>, vector<64x128xbf16>, vector<8x128xf32> -> vector<8x128xf32>
      %c0_27 = arith.constant 0 : index
      %c0_28 = arith.constant 0 : index
      %34 = vector.load %arg9[%c0_27, %c0_28] : memref<1x128xf32, #tpu.memory_space<vmem>>, vector<1x128xf32>
      %35 = vector.broadcast %34 : vector<1x128xf32> to vector<8x128xf32>
      %36 = arith.addf %33, %35 : vector<8x128xf32>
      %37 = arith.mulf %36, %36 : vector<8x128xf32>
      %cst_29 = arith.constant dense<0.000000e+00> : vector<8xf32>
      %38 = vector.multi_reduction <add>, %37, %cst_29 [1] : vector<8x128xf32> to vector<8xf32>
      %39 = vector.shape_cast %38 : vector<8xf32> to vector<8x1xf32>
      %cst_30 = arith.constant 1.000000e-24 : f32
      %40 = vector.broadcast %cst_30 : f32 to vector<8x1xf32>
      %41 = arith.maximumf %39, %40 : vector<8x1xf32>
      %42 = math.rsqrt %41 : vector<8x1xf32>
      %43 = vector.broadcast %42 : vector<8x1xf32> to vector<8x128xf32>
      %44 = arith.mulf %36, %43 : vector<8x128xf32>
      %c0_31 = arith.constant 0 : index
      %c0_32 = arith.constant 0 : index
      %45 = vector.load %arg12[%c0_31, %c0_32] : memref<8x128xf32, #tpu.memory_space<vmem>>, vector<8x128xf32>
      tpu.vector_store %arg12[%c0_31, %c0_32], %44 {strides = array<i32>} : memref<8x128xf32, #tpu.memory_space<vmem>>, vector<8x128xf32>,
      %46 = arith.truncf %44 : vector<8x128xf32> to vector<8x128xbf16>
      %c0_33 = arith.constant 0 : index
      %c0_34 = arith.constant 0 : index
      %47 = vector.load %arg10[%c0_33, %c0_34] : memref<128x128xbf16, #tpu.memory_space<vmem>>, vector<128x128xbf16>
      %cst_35 = arith.constant dense<0.000000e+00> : vector<8x128xf32>
      %48 = tpu.matmul %46, %47, %cst_35 {dimension_numbers = #tpu.dot_dimension_numbers<[1], [0], [0], [1], [0, 0, 1, 1], [], []>} : vector<8x128xbf16>, vector<128x128xbf16>, vector<8x128xf32> -> vector<8x128xf32>
      %c0_36 = arith.constant 0 : index
      %c0_37 = arith.constant 0 : index
      %49 = vector.load %arg11[%c0_36, %c0_37] : memref<8x128xf32, #tpu.memory_space<vmem>>, vector<8x128xf32>
      tpu.vector_store %arg11[%c0_36, %c0_37], %48 {strides = array<i32>} : memref<8x128xf32, #tpu.memory_space<vmem>>, vector<8x128xf32>,
    } else {
    }
    return
  }
  func.func @transform_0(%arg0: i32, %arg1: i32) -> (i32, i32, i32) {
    %c0_i32 = arith.constant 0 : i32
    %c0_i32_0 = arith.constant 0 : i32
    return %arg0, %c0_i32, %arg1 : i32, i32, i32
  }
  func.func @transform_1(%arg0: i32, %arg1: i32) -> (i32, i32) {
    %c0_i32 = arith.constant 0 : i32
    %c0_i32_0 = arith.constant 0 : i32
    return %arg0, %c0_i32 : i32, i32
  }
  func.func @transform_2(%arg0: i32, %arg1: i32) -> (i32, i32) {
    %c0_i32 = arith.constant 0 : i32
    %c0_i32_0 = arith.constant 0 : i32
    %c0_i32_1 = arith.constant 0 : i32
    return %c0_i32, %c0_i32_0 : i32, i32
  }
  func.func @transform_3(%arg0: i32, %arg1: i32) -> (i32, i32) {
    %c0_i32 = arith.constant 0 : i32
    %c0_i32_0 = arith.constant 0 : i32
    %c0_i32_1 = arith.constant 0 : i32
    return %c0_i32, %c0_i32_0 : i32, i32
  }
  func.func @transform_4(%arg0: i32, %arg1: i32) -> (i32, i32) {
    %c0_i32 = arith.constant 0 : i32
    %c0_i32_0 = arith.constant 0 : i32
    %c0_i32_1 = arith.constant 0 : i32
    return %c0_i32, %c0_i32_0 : i32, i32
  }
  func.func @transform_5(%arg0: i32, %arg1: i32) -> (i32, i32) {
    %c0_i32 = arith.constant 0 : i32
    %c0_i32_0 = arith.constant 0 : i32
    %c0_i32_1 = arith.constant 0 : i32
    return %c0_i32, %c0_i32_0 : i32, i32
  }
  func.func @transform_6(%arg0: i32, %arg1: i32) -> (i32, i32) {
    %c0_i32 = arith.constant 0 : i32
    %c0_i32_0 = arith.constant 0 : i32
    %c0_i32_1 = arith.constant 0 : i32
    return %c0_i32, %c0_i32_0 : i32, i32
  }
  func.func @transform_7(%arg0: i32, %arg1: i32) -> (i32, i32) {
    %c0_i32 = arith.constant 0 : i32
    %c0_i32_0 = arith.constant 0 : i32
    %c0_i32_1 = arith.constant 0 : i32
    return %c0_i32, %c0_i32_0 : i32, i32
  }
  func.func @transform_8(%arg0: i32, %arg1: i32) -> (i32, i32) {
    %c0_i32 = arith.constant 0 : i32
    %c0_i32_0 = arith.constant 0 : i32
    %c0_i32_1 = arith.constant 0 : i32
    return %c0_i32, %c0_i32_0 : i32, i32
  }
  func.func @transform_9(%arg0: i32, %arg1: i32) -> (i32, i32) {
    %c0_i32 = arith.constant 0 : i32
    %c0_i32_0 = arith.constant 0 : i32
    return %arg0, %c0_i32 : i32, i32
  }
  func.func @transform_10(%arg0: i32, %arg1: i32) -> (i32, i32) {
    %c0_i32 = arith.constant 0 : i32
    %c0_i32_0 = arith.constant 0 : i32
    return %arg0, %c0_i32 : i32, i32
  }
}

</mosaic_0001>

<llo_original>
// kernel: tpu_custom_call.1
$region0: #{tpu_custom_call.1}
  #allocation0 [shape = 'u32[]', space=smem, size = 0x4, offset = 0x4, fixed_abs, tag = 'smem constant byte address 0x4 - core index']
  #allocation1 [shape = 'u32[144,128]{1,0:T(1,128)}', space=vmem, size = 0x12000, scoped, tag = 'internal scratch']
  #allocation2 [shape = 'f32[8,4]{1,0:T(8,128)}', space=vmem, size = 0x1000, scoped, tag = 'scratch operand']
  %s0 = inlined_call_operand.hbm [shape: f32[8,4,256], index: 0, kind: input, shape index: {}]
  %s1 = inlined_call_operand.vmem [shape: f32[8,1], index: 1, kind: input, shape index: {}]
  %s2 = inlined_call_operand.vmem [shape: bf16[4,32], index: 2, kind: input, shape index: {}]
  %s3 = inlined_call_operand.vmem [shape: f32[1,32], index: 3, kind: input, shape index: {}]
  %s4 = inlined_call_operand.vmem [shape: bf16[32,64], index: 4, kind: input, shape index: {}]
  %s5 = inlined_call_operand.vmem [shape: f32[1,64], index: 5, kind: input, shape index: {}]
  %s6 = inlined_call_operand.hbm [shape: bf16[64,128], index: 6, kind: input, shape index: {}]
  %s7 = inlined_call_operand.vmem [shape: f32[1,128], index: 7, kind: input, shape index: {}]
  %s8 = inlined_call_operand.hbm [shape: bf16[128,128], index: 8, kind: input, shape index: {}]
  %s9 = inlined_call_operand.hbm [shape: f32[8,128], index: 9, kind: output, shape index: {0}]
  %s10 = inlined_call_operand.hbm [shape: f32[8,128], index: 10, kind: output, shape index: {1}]
  %11 = xla_tuple %s9, %s10
  %s12 = sld [smem:[#allocation0]]
  $region97: #{tpu_custom_call.1} parent=0
    _
  %s14 = ssub.s32 1, %s12
  %s15 = scalar_select 0, %s14, %s12
  $region1: #{tpu_custom_call.1} parent=0
    #allocation3 [shape = 'u8[32768]{0}', space=vmem, size = 0x8000, scoped, tag = 'input window, operand 0']
    #allocation4 [shape = 's32[2]{0}', space=sflag, size = 0x8, scoped, tag = 'scoped memory for tpu_custom_call.1']
    #allocation5 [shape = 's32[2]{0}', space=sflag, size = 0x8, scoped, tag = 'scoped memory for tpu_custom_call.1']
    #allocation6 [shape = 'u8[16384]{0}', space=vmem, size = 0x4000, scoped, tag = 'input window, operand 6, single buffered']
    #allocation7 [shape = 's32[1]{0}', space=sflag, size = 0x4, scoped, tag = 'scoped memory for tpu_custom_call.1']
    #allocation8 [shape = 'u8[32768]{0}', space=vmem, size = 0x8000, scoped, tag = 'input window, operand 8, single buffered']
    #allocation9 [shape = 'u8[4096]{0}', space=vmem, size = 0x1000, scoped, tag = 'output window, operand 0, single buffered']
    #allocation10 [shape = 'u8[4096]{0}', space=vmem, size = 0x1000, scoped, tag = 'output window, operand 1, single buffered']
    #allocation11 [shape = 's32[1]{0}', space=sflag, size = 0x4, scoped, tag = 'scoped memory for tpu_custom_call.1']
    %16 = vsyncpa [#allocation4], 0
    %s17 = scalar_lea.sflag [#allocation4], 1
    %18 = vsyncpa %s17, 0
    %19 = vsyncpa [#allocation7], 0
    %20 = vsyncpa [#allocation5], 0
    %21 = vsyncpa [#allocation11], 0
    loop: start=0, step=1, limit=4
    $region2: #{tpu_custom_call.1} parent=1 // loop_pre_header
      _
    $region3: #{tpu_custom_call.1} parent=1 // loop_header
      %s23 = sphi 0, %s27
      %p24 = scmp.ge.s32.totalorder %s23, 4
      %s30 = sphi 0, %s42
      %s31 = sphi 0, %s38
      %s32 = sphi 0, %s30
      %s33 = sphi 0, %s31
      %s34 = sphi 0, %s32
      %s35 = sphi 0, %s33
      %s47 = sphi 0, %s49
      %s50 = sphi 0, %s47
      %s51 = sphi 0, %s50
      %s67 = sphi 0, %s51
      %s73 = sphi 0, %s75
      %s76 = sphi 0, %s73
      %s77 = sphi 0, %s76
      %s93 = sphi 0, %s77
      %s97 = sphi 0, %s97
      %s99 = sphi 0, %s97
      %s100 = sphi 0, %s99
      %s114 = sphi 0, %s100
      %s118 = sphi 0, %s118
      %s120 = sphi 0, %s118
      %s121 = sphi 0, %s120
      %s135 = sphi 0, %s121
      %s139 = sphi 0, %s139
      %s141 = sphi 0, %s139
      %s142 = sphi 0, %s141
      %s156 = sphi 0, %s142
      %s160 = sphi 0, %s160
      %s162 = sphi 0, %s160
      %s163 = sphi 0, %s162
      %s177 = sphi 0, %s163
      %s181 = sphi 0, %s181
      %s183 = sphi 0, %s181
      %s184 = sphi 0, %s183
      %s198 = sphi 0, %s184
      %s202 = sphi 0, %s202
      %s204 = sphi 0, %s202
      %s205 = sphi 0, %s204
      %s219 = sphi 0, %s205
      %s223 = sphi 0, %s223
      %s225 = sphi 0, %s223
      %s226 = sphi 0, %s225
      %s240 = sphi 0, %s226
      %s246 = sphi 0, %s248
      %s249 = sphi 0, %s246
      %s250 = sphi 0, %s249
      %s266 = sphi 0, %s250
      %s272 = sphi 0, %s274
      %s275 = sphi 0, %s272
      %s276 = sphi 0, %s275
      %s292 = sphi 0, %s276
    $region4: #{tpu_custom_call.1} parent=1 // loop_header_branch
      %26 = sbr.rel (%p24) target = $region8
    $region5: #{tpu_custom_call.1} parent=1 // loop_body
      %s28 = ssub.s32 %s23, 1
      %s29 = ssub.s32 %s23, 2
      %s36 = sadd.s32 1, %s31
      %p37 = scmp.ge.s32.totalorder %s36, 2
      %s38 = scalar_select %p37, 0, %s36
      %s39 = sadd.s32 1, %s30
      %s40 = scalar_select %p37, %s39, %s30
      %p41 = scmp.ge.s32.totalorder %s40, 1
      %s42 = scalar_select %p41, 0, %s40
      %s43 = ssub.s32 %s30, %s42
      %s44 = ssub.s32 %s31, %s38
      %s45 = sor.u32 %s43, %s44
      %p46 = scmp.eq.s32.totalorder %s45, 0
      %s48 = sadd.s32 %s47, 1
      %s49 = scalar_select %p46, %s47, %s48
      %p52 = pneg %p46
      %p53 = scmp.eq.s32.totalorder %s23, 1
      %p54 = por %p52, %p53
      %p55 = scmp.ne.s32.totalorder %s47, %s50
      %p56 = scmp.eq.s32.totalorder %s23, 0
      %p57 = por %p55, %p56
      %p58 = scmp.ne.s32.totalorder %s47, %s50
      %p59 = scmp.eq.s32.totalorder %s28, 1
      %p60 = por %p58, %p59
      %p61 = scmp.ne.s32.totalorder %s50, %s51
      %p62 = scmp.eq.s32.totalorder %s28, 0
      %p63 = por %p61, %p62
      %p64 = scmp.ne.s32.totalorder %s50, %s51
      %p65 = scmp.eq.s32.totalorder %s29, 1
      %p66 = por %p64, %p65
      %p68 = scmp.ne.s32.totalorder %s51, %s67
      %p69 = scmp.eq.s32.totalorder %s29, 0
      %p70 = por %p68, %p69
      %s71 = ssub.s32 %s30, %s42
      %p72 = scmp.eq.s32.totalorder %s71, 0
      %s74 = sadd.s32 %s73, 1
      %s75 = scalar_select %p72, %s73, %s74
      %p78 = pneg %p72
      %p79 = scmp.eq.s32.totalorder %s23, 1
      %p80 = por %p78, %p79
      %p81 = scmp.ne.s32.totalorder %s73, %s76
      %p82 = scmp.eq.s32.totalorder %s23, 0
      %p83 = por %p81, %p82
      %p84 = scmp.ne.s32.totalorder %s73, %s76
      %p85 = scmp.eq.s32.totalorder %s28, 1
      %p86 = por %p84, %p85
      %p87 = scmp.ne.s32.totalorder %s76, %s77
      %p88 = scmp.eq.s32.totalorder %s28, 0
      %p89 = por %p87, %p88
      %p90 = scmp.ne.s32.totalorder %s76, %s77
      %p91 = scmp.eq.s32.totalorder %s29, 1
      %p92 = por %p90, %p91
      %p94 = scmp.ne.s32.totalorder %s77, %s93
      %p95 = scmp.eq.s32.totalorder %s29, 0
      %p96 = por %p94, %p95
      %s98 = sadd.s32 %s97, 1
      %p101 = scmp.eq.s32.totalorder %s23, 1
      %p102 = scmp.ne.s32.totalorder %s97, %s99
      %p103 = scmp.eq.s32.totalorder %s23, 0
      %p104 = por %p102, %p103
      %p105 = scmp.ne.s32.totalorder %s97, %s99
      %p106 = scmp.eq.s32.totalorder %s28, 1
      %p107 = por %p105, %p106
      %p108 = scmp.ne.s32.totalorder %s99, %s100
      %p109 = scmp.eq.s32.totalorder %s28, 0
      %p110 = por %p108, %p109
      %p111 = scmp.ne.s32.totalorder %s99, %s100
      %p112 = scmp.eq.s32.totalorder %s29, 1
      %p113 = por %p111, %p112
      %p115 = scmp.ne.s32.totalorder %s100, %s114
      %p116 = scmp.eq.s32.totalorder %s29, 0
      %p117 = por %p115, %p116
      %s119 = sadd.s32 %s118, 1
      %p122 = scmp.eq.s32.totalorder %s23, 1
      %p123 = scmp.ne.s32.totalorder %s118, %s120
      %p124 = scmp.eq.s32.totalorder %s23, 0
      %p125 = por %p123, %p124
      %p126 = scmp.ne.s32.totalorder %s118, %s120
      %p127 = scmp.eq.s32.totalorder %s28, 1
      %p128 = por %p126, %p127
      %p129 = scmp.ne.s32.totalorder %s120, %s121
      %p130 = scmp.eq.s32.totalorder %s28, 0
      %p131 = por %p129, %p130
      %p132 = scmp.ne.s32.totalorder %s120, %s121
      %p133 = scmp.eq.s32.totalorder %s29, 1
      %p134 = por %p132, %p133
      %p136 = scmp.ne.s32.totalorder %s121, %s135
      %p137 = scmp.eq.s32.totalorder %s29, 0
      %p138 = por %p136, %p137
      %s140 = sadd.s32 %s139, 1
      %p143 = scmp.eq.s32.totalorder %s23, 1
      %p144 = scmp.ne.s32.totalorder %s139, %s141
      %p145 = scmp.eq.s32.totalorder %s23, 0
      %p146 = por %p144, %p145
      %p147 = scmp.ne.s32.totalorder %s139, %s141
      %p148 = scmp.eq.s32.totalorder %s28, 1
      %p149 = por %p147, %p148
      %p150 = scmp.ne.s32.totalorder %s141, %s142
      %p151 = scmp.eq.s32.totalorder %s28, 0
      %p152 = por %p150, %p151
      %p153 = scmp.ne.s32.totalorder %s141, %s142
      %p154 = scmp.eq.s32.totalorder %s29, 1
      %p155 = por %p153, %p154
      %p157 = scmp.ne.s32.totalorder %s142, %s156
      %p158 = scmp.eq.s32.totalorder %s29, 0
      %p159 = por %p157, %p158
      %s161 = sadd.s32 %s160, 1
      %p164 = scmp.eq.s32.totalorder %s23, 1
      %p165 = scmp.ne.s32.totalorder %s160, %s162
      %p166 = scmp.eq.s32.totalorder %s23, 0
      %p167 = por %p165, %p166
      %p168 = scmp.ne.s32.totalorder %s160, %s162
      %p169 = scmp.eq.s32.totalorder %s28, 1
      %p170 = por %p168, %p169
      %p171 = scmp.ne.s32.totalorder %s162, %s163
      %p172 = scmp.eq.s32.totalorder %s28, 0
      %p173 = por %p171, %p172
      %p174 = scmp.ne.s32.totalorder %s162, %s163
      %p175 = scmp.eq.s32.totalorder %s29, 1
      %p176 = por %p174, %p175
      %p178 = scmp.ne.s32.totalorder %s163, %s177
      %p179 = scmp.eq.s32.totalorder %s29, 0
      %p180 = por %p178, %p179
      %s182 = sadd.s32 %s181, 1
      %p185 = scmp.eq.s32.totalorder %s23, 1
      %p186 = scmp.ne.s32.totalorder %s181, %s183
      %p187 = scmp.eq.s32.totalorder %s23, 0
      %p188 = por %p186, %p187
      %p189 = scmp.ne.s32.totalorder %s181, %s183
      %p190 = scmp.eq.s32.totalorder %s28, 1
      %p191 = por %p189, %p190
      %p192 = scmp.ne.s32.totalorder %s183, %s184
      %p193 = scmp.eq.s32.totalorder %s28, 0
      %p194 = por %p192, %p193
      %p195 = scmp.ne.s32.totalorder %s183, %s184
      %p196 = scmp.eq.s32.totalorder %s29, 1
      %p197 = por %p195, %p196
      %p199 = scmp.ne.s32.totalorder %s184, %s198
      %p200 = scmp.eq.s32.totalorder %s29, 0
      %p201 = por %p199, %p200
      %s203 = sadd.s32 %s202, 1
      %p206 = scmp.eq.s32.totalorder %s23, 1
      %p207 = scmp.ne.s32.totalorder %s202, %s204
      %p208 = scmp.eq.s32.totalorder %s23, 0
      %p209 = por %p207, %p208
      %p210 = scmp.ne.s32.totalorder %s202, %s204
      %p211 = scmp.eq.s32.totalorder %s28, 1
      %p212 = por %p210, %p211
      %p213 = scmp.ne.s32.totalorder %s204, %s205
      %p214 = scmp.eq.s32.totalorder %s28, 0
      %p215 = por %p213, %p214
      %p216 = scmp.ne.s32.totalorder %s204, %s205
      %p217 = scmp.eq.s32.totalorder %s29, 1
      %p218 = por %p216, %p217
      %p220 = scmp.ne.s32.totalorder %s205, %s219
      %p221 = scmp.eq.s32.totalorder %s29, 0
      %p222 = por %p220, %p221
      %s224 = sadd.s32 %s223, 1
      %p227 = scmp.eq.s32.totalorder %s23, 1
      %p228 = scmp.ne.s32.totalorder %s223, %s225
      %p229 = scmp.eq.s32.totalorder %s23, 0
      %p230 = por %p228, %p229
      %p231 = scmp.ne.s32.totalorder %s223, %s225
      %p232 = scmp.eq.s32.totalorder %s28, 1
      %p233 = por %p231, %p232
      %p234 = scmp.ne.s32.totalorder %s225, %s226
      %p235 = scmp.eq.s32.totalorder %s28, 0
      %p236 = por %p234, %p235
      %p237 = scmp.ne.s32.totalorder %s225, %s226
      %p238 = scmp.eq.s32.totalorder %s29, 1
      %p239 = por %p237, %p238
      %p241 = scmp.ne.s32.totalorder %s226, %s240
      %p242 = scmp.eq.s32.totalorder %s29, 0
      %p243 = por %p241, %p242
      %s244 = ssub.s32 %s30, %s42
      %p245 = scmp.eq.s32.totalorder %s244, 0
      %s247 = sadd.s32 %s246, 1
      %s248 = scalar_select %p245, %s246, %s247
      %p251 = pneg %p245
      %p252 = scmp.eq.s32.totalorder %s23, 1
      %p253 = por %p251, %p252
      %p254 = scmp.ne.s32.totalorder %s246, %s249
      %p255 = scmp.eq.s32.totalorder %s23, 0
      %p256 = por %p254, %p255
      %p257 = scmp.ne.s32.totalorder %s246, %s249
      %p258 = scmp.eq.s32.totalorder %s28, 1
      %p259 = por %p257, %p258
      %p260 = scmp.ne.s32.totalorder %s249, %s250
      %p261 = scmp.eq.s32.totalorder %s28, 0
      %p262 = por %p260, %p261
      %p263 = scmp.ne.s32.totalorder %s249, %s250
      %p264 = scmp.eq.s32.totalorder %s29, 1
      %p265 = por %p263, %p264
      %p267 = scmp.ne.s32.totalorder %s250, %s266
      %p268 = scmp.eq.s32.totalorder %s29, 0
      %p269 = por %p267, %p268
      %s270 = ssub.s32 %s30, %s42
      %p271 = scmp.eq.s32.totalorder %s270, 0
      %s273 = sadd.s32 %s272, 1
      %s274 = scalar_select %p271, %s272, %s273
      %p277 = pneg %p271
      %p278 = scmp.eq.s32.totalorder %s23, 1
      %p279 = por %p277, %p278
      %p280 = scmp.ne.s32.totalorder %s272, %s275
      %p281 = scmp.eq.s32.totalorder %s23, 0
      %p282 = por %p280, %p281
      %p283 = scmp.ne.s32.totalorder %s272, %s275
      %p284 = scmp.eq.s32.totalorder %s28, 1
      %p285 = por %p283, %p284
      %p286 = scmp.ne.s32.totalorder %s275, %s276
      %p287 = scmp.eq.s32.totalorder %s28, 0
      %p288 = por %p286, %p287
      %p289 = scmp.ne.s32.totalorder %s275, %s276
      %p290 = scmp.eq.s32.totalorder %s29, 1
      %p291 = por %p289, %p290
      %p293 = scmp.ne.s32.totalorder %s276, %s292
      %p294 = scmp.eq.s32.totalorder %s29, 0
      %p295 = por %p293, %p294
      %p296 = scmp.le.s32.totalorder 1, %s23
      %p297 = scmp.lt.s32.totalorder %s23, 3
      %p298 = pnand %p296, %p297
      %p299 = pneg %p298
      // Predicated region
      $region9: #{tpu_custom_call.1} parent=5 // pred_check
        _
      $region10: #{tpu_custom_call.1} parent=5 // pred_check_branch
        %301 = sbr.rel (%p298) target = $region12
      $region11: #{tpu_custom_call.1} parent=5 // pred_region
        %s302 = ssub.s32 %s23, 1
        // Predicated region
        $region13: #{tpu_custom_call.1} parent=11 // pred_check
          %p303 = pneg %p89
        $region14: #{tpu_custom_call.1} parent=11 // pred_check_branch
          %305 = sbr.rel (%p303) target = $region16
        $region15: #{tpu_custom_call.1} parent=11 // pred_region
          %p306 = scmp.lt.s32.totalorder %s32, 0
          %s307 = scalar_select %p306, %s32, 0
          %s308 = smul.addr %s307, 8
          %s309 = scalar_lea.vmem %s1, %s308
        $region16: #{tpu_custom_call.1} parent=11 // pred_fallthru
          _
        // Predicated region
        $region17: #{tpu_custom_call.1} parent=11 // pred_check
          %p310 = pneg %p110
        $region18: #{tpu_custom_call.1} parent=11 // pred_check_branch
          %312 = sbr.rel (%p310) target = $region20
        $region19: #{tpu_custom_call.1} parent=11 // pred_region
          _
        $region20: #{tpu_custom_call.1} parent=11 // pred_fallthru
          _
        // Predicated region
        $region21: #{tpu_custom_call.1} parent=11 // pred_check
          %p313 = pneg %p131
        $region22: #{tpu_custom_call.1} parent=11 // pred_check_branch
          %315 = sbr.rel (%p313) target = $region24
        $region23: #{tpu_custom_call.1} parent=11 // pred_region
          _
        $region24: #{tpu_custom_call.1} parent=11 // pred_fallthru
          _
        // Predicated region
        $region25: #{tpu_custom_call.1} parent=11 // pred_check
          %p316 = pneg %p152
        $region26: #{tpu_custom_call.1} parent=11 // pred_check_branch
          %318 = sbr.rel (%p316) target = $region28
        $region27: #{tpu_custom_call.1} parent=11 // pred_region
          _
        $region28: #{tpu_custom_call.1} parent=11 // pred_fallthru
          _
        // Predicated region
        $region29: #{tpu_custom_call.1} parent=11 // pred_check
          %p319 = pneg %p173
        $region30: #{tpu_custom_call.1} parent=11 // pred_check_branch
          %321 = sbr.rel (%p319) target = $region32
        $region31: #{tpu_custom_call.1} parent=11 // pred_region
          _
        $region32: #{tpu_custom_call.1} parent=11 // pred_fallthru
          _
        // Predicated region
        $region33: #{tpu_custom_call.1} parent=11 // pred_check
          %p322 = pneg %p194
        $region34: #{tpu_custom_call.1} parent=11 // pred_check_branch
          %324 = sbr.rel (%p322) target = $region36
        $region35: #{tpu_custom_call.1} parent=11 // pred_region
          %s326 = ssub.s32 512, 512
          %327 = vsyncadd [#allocation7], %s326
          %s328 = sshll.u32 [#allocation6], 4
          %s329 = int_to_ptr.vmem [resolvable:$true] %s328
          %334 = dma.hbm_to_vmem [thread:$0]  %s6, 512, %s329, [#allocation7], 64, 64, 4
        $region36: #{tpu_custom_call.1} parent=11 // pred_fallthru
          _
        // Predicated region
        $region37: #{tpu_custom_call.1} parent=11 // pred_check
          %p335 = pneg %p215
        $region38: #{tpu_custom_call.1} parent=11 // pred_check_branch
          %337 = sbr.rel (%p335) target = $region40
        $region39: #{tpu_custom_call.1} parent=11 // pred_region
          _
        $region40: #{tpu_custom_call.1} parent=11 // pred_fallthru
          _
        // Predicated region
        $region41: #{tpu_custom_call.1} parent=11 // pred_check
          %p338 = pneg %p236
        $region42: #{tpu_custom_call.1} parent=11 // pred_check_branch
          %340 = sbr.rel (%p338) target = $region44
        $region43: #{tpu_custom_call.1} parent=11 // pred_region
          %s342 = ssub.s32 1024, 1024
          %343 = vsyncadd [#allocation7], %s342
          %s344 = sshll.u32 [#allocation8], 4
          %s345 = int_to_ptr.vmem [resolvable:$true] %s344
          %350 = dma.hbm_to_vmem [thread:$0]  %s8, 1024, %s345, [#allocation7], 64, 64, 4
        $region44: #{tpu_custom_call.1} parent=11 // pred_fallthru
          _
      $region12: #{tpu_custom_call.1} parent=5 // pred_fallthru
        _
      %p351 = scmp.lt.s32.totalorder %s23, 2
      // Predicated region
      $region45: #{tpu_custom_call.1} parent=5 // pred_check
        %p352 = pneg %p351
      $region46: #{tpu_custom_call.1} parent=5 // pred_check_branch
        %354 = sbr.rel (%p352) target = $region48
      $region47: #{tpu_custom_call.1} parent=5 // pred_region
        // Predicated region
        $region49: #{tpu_custom_call.1} parent=47 // pred_check
          %p355 = pneg %p57
        $region50: #{tpu_custom_call.1} parent=47 // pred_check_branch
          %357 = sbr.rel (%p355) target = $region52
        $region51: #{tpu_custom_call.1} parent=47 // pred_region
          %s358 = sand.u32 %s47, 1
          %s359 = scalar_lea.sflag [#allocation4], %s358
          %s360 = sand.u32 %s47, 1
          %s361 = smul.addr %s360, 32
          %s362 = scalar_lea.vmem [#allocation3], %s361
          %s363 = smul.u32 8, %s30
          %s365 = ssub.s32 512, 512
          %366 = vsyncadd %s359, %s365
          %s367 = smul.addr %s363, 2
          %s368 = sadd.s32 %s31, %s367
          %s369 = smul.addr %s368, 64
          %s370 = scalar_lea.hbm %s0, %s369
          %s371 = sshll.u32 %s362, 4
          %s372 = int_to_ptr.vmem [resolvable:$true] %s371
          %377 = dma.hbm_to_vmem [thread:$0]  %s370, 512, %s372, %s359, 128, 64, 4
        $region52: #{tpu_custom_call.1} parent=47 // pred_fallthru
          _
      $region48: #{tpu_custom_call.1} parent=5 // pred_fallthru
        _
      %p378 = scmp.le.s32.totalorder 1, %s23
      %p379 = scmp.lt.s32.totalorder %s23, 3
      %p380 = pnand %p378, %p379
      %p381 = pneg %p380
      // Predicated region
      $region53: #{tpu_custom_call.1} parent=5 // pred_check
        _
      $region54: #{tpu_custom_call.1} parent=5 // pred_check_branch
        %383 = sbr.rel (%p380) target = $region56
      $region55: #{tpu_custom_call.1} parent=5 // pred_region
        %s384 = ssub.s32 %s23, 1
        %s385 = sand.u32 %s50, 1
        %s386 = scalar_lea.sflag [#allocation4], %s385
        %s387 = sand.u32 %s50, 1
        %s388 = smul.addr %s387, 32
        %s389 = scalar_lea.vmem [#allocation3], %s388
        // Predicated region
        $region57: #{tpu_custom_call.1} parent=55 // pred_check
          %p390 = pneg %p63
        $region58: #{tpu_custom_call.1} parent=55 // pred_check_branch
          %392 = sbr.rel (%p390) target = $region60
        $region59: #{tpu_custom_call.1} parent=55 // pred_region
          %393 = dma.done %s386, 512
        $region60: #{tpu_custom_call.1} parent=55 // pred_fallthru
          _
        // Predicated region
        $region61: #{tpu_custom_call.1} parent=55 // pred_check
          %p394 = pneg %p194
        $region62: #{tpu_custom_call.1} parent=55 // pred_check_branch
          %396 = sbr.rel (%p394) target = $region64
        $region63: #{tpu_custom_call.1} parent=55 // pred_region
          %397 = dma.done [#allocation7], 512
        $region64: #{tpu_custom_call.1} parent=55 // pred_fallthru
          _
        // Predicated region
        $region65: #{tpu_custom_call.1} parent=55 // pred_check
          %p398 = pneg %p236
        $region66: #{tpu_custom_call.1} parent=55 // pred_check_branch
          %400 = sbr.rel (%p398) target = $region68
        $region67: #{tpu_custom_call.1} parent=55 // pred_region
          %401 = dma.done [#allocation7], 1024
        $region68: #{tpu_custom_call.1} parent=55 // pred_fallthru
          _
        %s402 = sand.u32 %s50, 1
        %s403 = scalar_lea.sflag [#allocation4], %s402
        %s404 = sand.u32 %s50, 1
        %s405 = smul.addr %s404, 32
        %s406 = scalar_lea.vmem [#allocation3], %s405
        %p407 = pneg %p63
        %p408 = pneg %p60
        %p409 = scmp.lt.s32.totalorder %s32, 0
        %s410 = scalar_select %p409, %s32, 0
        %s411 = smul.addr %s410, 8
        %s412 = scalar_lea.vmem %s1, %s411
        %p413 = pneg %p89
        %p414 = pneg %p86
        %p415 = pneg %p110
        %p416 = pneg %p107
        %p417 = pneg %p131
        %p418 = pneg %p128
        %p419 = pneg %p152
        %p420 = pneg %p149
        %p421 = pneg %p173
        %p422 = pneg %p170
        %p423 = pneg %p194
        %p424 = pneg %p191
        %p425 = pneg %p215
        %p426 = pneg %p212
        %p427 = pneg %p236
        %p428 = pneg %p233
        %p429 = pneg %p262
        %p430 = pneg %p259
        %p431 = pneg %p288
        %p432 = pneg %p285
        %s433 = smul.u32 8, %s32
        %p434 = scmp.lt.s32.totalorder %s32, 0
        %s435 = scalar_select %p434, %s32, 0
        %s436 = smul.addr %s435, 8
        %s437 = scalar_lea.vmem %s1, %s436
        %p439 = scmp.eq.s32.totalorder %s33, 0
        // Predicated region
        $region69: #{tpu_custom_call.1} parent=55 // pred_check
          %p440 = pneg %p439
        $region70: #{tpu_custom_call.1} parent=55 // pred_check_branch
          %442 = sbr.rel (%p440) target = $region72
        $region71: #{tpu_custom_call.1} parent=55 // pred_region
          %vm443 = vcmask 31744
          %444 = vst.msk [vmem:[#allocation2] sm:$0xff] %vm443, 0.0
        $region72: #{tpu_custom_call.1} parent=55 // pred_fallthru
          _
        %v445 = vld [vmem:[#allocation2] sm:$0xff]
        %v446 = vld [vmem:[%s389] sm:$0xf]
        %v447 = vld [vmem:[%s389 + $0x4] sm:$0xf]
        %v448 = vld [vmem:[%s389 + $0x8] sm:$0xf]
        %v449 = vld [vmem:[%s389 + $0xc] sm:$0xf]
        %v450 = vld [vmem:[%s389 + $0x10] sm:$0xf]
        %v451 = vld [vmem:[%s389 + $0x14] sm:$0xf]
        %v452 = vld [vmem:[%s389 + $0x18] sm:$0xf]
        %v453 = vld [vmem:[%s389 + $0x1c] sm:$0xf]
        %vm454 = vcmask 1043456
        %v455 = vsel %vm454, %v446, 0.0
        %456 = vadd.xlane.f32.xlu0 %v455
        %v457 = vpop.xlane.xlu0 %456
        %v458 = vsel %vm454, %v447, 0.0
        %459 = vadd.xlane.f32.xlu0 %v458
        %v460 = vpop.xlane.xlu0 %459
        %v461 = vsel %vm454, %v448, 0.0
        %462 = vadd.xlane.f32.xlu0 %v461
        %v463 = vpop.xlane.xlu0 %462
        %v464 = vsel %vm454, %v449, 0.0
        %465 = vadd.xlane.f32.xlu0 %v464
        %v466 = vpop.xlane.xlu0 %465
        %v467 = vsel %vm454, %v450, 0.0
        %468 = vadd.xlane.f32.xlu0 %v467
        %v469 = vpop.xlane.xlu0 %468
        %v470 = vsel %vm454, %v451, 0.0
        %471 = vadd.xlane.f32.xlu0 %v470
        %v472 = vpop.xlane.xlu0 %471
        %v473 = vsel %vm454, %v452, 0.0
        %474 = vadd.xlane.f32.xlu0 %v473
        %v475 = vpop.xlane.xlu0 %474
        %v476 = vsel %vm454, %v453, 0.0
        %477 = vadd.xlane.f32.xlu0 %v476
        %v478 = vpop.xlane.xlu0 %477
        %v487 = vlaneseq
        %v488 = vand.u32 %v487, 127
        %v489 = vlaneseq
        %v490 = vshrl.u32 %v489, 7
        %v491 = vsub.s32 %v488, %v490
        %v492 = vrot.slane %v457, %v491
        %v493 = vlaneseq
        %v494 = vshrl.u32 %v493, 7
        %v495 = vsub.s32 %v488, %v494
        %v496 = vrot.slane %v460, %v495
        %v497 = vlaneseq
        %v498 = vshrl.u32 %v497, 7
        %v499 = vsub.s32 %v488, %v498
        %v500 = vrot.slane %v463, %v499
        %v501 = vlaneseq
        %v502 = vshrl.u32 %v501, 7
        %v503 = vsub.s32 %v488, %v502
        %v504 = vrot.slane %v466, %v503
        %v505 = vlaneseq
        %v506 = vshrl.u32 %v505, 7
        %v507 = vsub.s32 %v488, %v506
        %v508 = vrot.slane %v469, %v507
        %v509 = vlaneseq
        %v510 = vshrl.u32 %v509, 7
        %v511 = vsub.s32 %v488, %v510
        %v512 = vrot.slane %v472, %v511
        %v513 = vlaneseq
        %v514 = vshrl.u32 %v513, 7
        %v515 = vsub.s32 %v488, %v514
        %v516 = vrot.slane %v475, %v515
        %v517 = vlaneseq
        %v518 = vshrl.u32 %v517, 7
        %v519 = vsub.s32 %v488, %v518
        %v520 = vrot.slane %v478, %v519
        %vm521 = vcmask 1041409
        %v522 = vsel %vm521, %v496, %v492
        %vm523 = vcmask 1042434
        %v524 = vsel %vm523, %v500, %v522
        %vm525 = vcmask 1043459
        %v526 = vsel %vm525, %v504, %v524
        %vm527 = vcmask 1044484
        %v528 = vsel %vm527, %v508, %v526
        %vm529 = vcmask 1045509
        %v530 = vsel %vm529, %v512, %v528
        %vm531 = vcmask 1046534
        %v532 = vsel %vm531, %v516, %v530
        %vm533 = vcmask 1047559
        %v534 = vsel %vm533, %v520, %v532
        %v536 = vadd.f32 %v445, %v534
        %vm537 = vcmask 31744
        %538 = vst.msk [vmem:[#allocation2] sm:$0xff] %vm537, %v536
        %p539 = scmp.eq.s32.totalorder %s33, 1
        // Predicated region
        $region73: #{tpu_custom_call.1} parent=55 // pred_check
          %p540 = pneg %p539
        $region74: #{tpu_custom_call.1} parent=55 // pred_check_branch
          %542 = sbr.rel (%p540) target = $region76
        $region75: #{tpu_custom_call.1} parent=55 // pred_region
          %v543 = vld [vmem:[#allocation2] sm:$0xff]
          %v544 = vld [vmem:[%s437] sm:$0xff]
          %546 = vset.pattern.permute.xlu0 0
          %547 = vperm.xlu0 %546, %v544
          %v548 = vpop.permute.xlu0 %547
          %v550 = vmul.f32 %v543, %v548
          %v551 = vpack.c.bf16 %v550, %v550
          %v552 = vld [vmem:[%s2] sm:$0x3]
          %v553 = vld [vmem:[%s3] sm:$0x1]
          %v555 = vlaneseq
          %v556 = vshrl.u32 %v555, 7
          %v557 = vsub.s32 0, %v556
          %v558 = vrot.slane %v553, %v557
          %v561 = vsel %vm537, %v551, 0
          %vm563 = vcmask 1041408
          %v565 = vsel %vm563, %v552, 0
          %567 = vmatprep.subr.bf16.mxu0 0
          %568 = vmatpush1.bf16.msra.mxu0 %v565
          %569 = vmatprep.subr.bf16.mxu0 0
          %570 = vmatpush1.bf16.msra.mxu0 0
          %571 = vmatprep.subr.bf16.mxu0 0
          %572 = vmatpush1.bf16.msra.mxu0 0
          %573 = vmatprep.subr.bf16.mxu0 0
          %574 = vmatpush1.bf16.msra.mxu0 0
          %575 = vmatprep.subr.bf16.mxu0 0
          %576 = vmatpush1.bf16.msra.mxu0 0
          %577 = vmatprep.subr.bf16.mxu0 0
          %578 = vmatpush1.bf16.msra.mxu0 0
          %579 = vmatprep.subr.bf16.mxu0 0
          %580 = vmatpush1.bf16.msra.mxu0 0
          %581 = vmatprep.subr.bf16.mxu0 0
          %582 = vmatpush1.bf16.msra.mxu0 0
          %583 = vmatprep.subr.bf16.mxu0 0
          %584 = vmatpush1.bf16.msra.mxu0 0
          %585 = vmatprep.subr.bf16.mxu0 0
          %586 = vmatpush1.bf16.msra.mxu0 0
          %587 = vmatprep.subr.bf16.mxu0 0
          %588 = vmatpush1.bf16.msra.mxu0 0
          %589 = vmatprep.subr.bf16.mxu0 0
          %590 = vmatpush1.bf16.msra.mxu0 0
          %591 = vmatprep.subr.bf16.mxu0 0
          %592 = vmatpush1.bf16.msra.mxu0 0
          %593 = vmatprep.subr.bf16.mxu0 0
          %594 = vmatpush1.bf16.msra.mxu0 0
          %595 = vmatprep.subr.bf16.mxu0 0
          %596 = vmatpush1.bf16.msra.mxu0 0
          %597 = vmatprep.subr.bf16.mxu0 0
          %598 = vmatpush1.bf16.msra.mxu0 0
          %599 = vmatprep.mubr.bf16.mxu0 0
          %600 = vmatmul.mubr.bf16.gmra.mrb[0].mxu0 %v561
          %v601 = vpop.f32.mrb[0].mxu0
          %v602 = vadd.f32 %v558, %v601
          %v603 = vpop.f32.mrb[0].mxu0
          %v604 = vpop.f32.mrb[0].mxu0
          %v605 = vpop.f32.mrb[0].mxu0
          %606 = vdwg.mxu0
          %v607 = vmax.f32 %v602, 0.0
          %v608 = vpack.c.bf16 %v607, %v607
          %v609 = vld [vmem:[%s4] sm:$0xf]
          %v610 = vld [vmem:[%s4 + $0x4] sm:$0xf]
          %v611 = vld [vmem:[%s4 + $0x8] sm:$0xf]
          %v612 = vld [vmem:[%s4 + $0xc] sm:$0xf]
          %v613 = vld [vmem:[%s5] sm:$0x1]
          %v615 = vlaneseq
          %v616 = vshrl.u32 %v615, 7
          %v617 = vsub.s32 0, %v616
          %v618 = vrot.slane %v613, %v617
          %v624 = vunpack.c.l.b16 %v609
          %v625 = vunpack.c.l.b16 %v610
          %v626 = vunpack.c.l.b16 %v611
          %v627 = vunpack.c.l.b16 %v612
          %v628 = vpack.c.b16 %v625, %v624
          %v629 = vpack.c.b16 %v627, %v626
          %vm632 = vcmask 261120
          %v634 = vsel %vm632, %v608, 0
          %636 = vmatprep.subr.bf16.mxu0 0
          %637 = vmatpush1.bf16.msra.mxu0 %v628
          %638 = vmatprep.subr.bf16.mxu0 0
          %639 = vmatpush1.bf16.msra.mxu0 %v629
          %640 = vmatprep.subr.bf16.mxu0 0
          %641 = vmatpush1.bf16.msra.mxu0 0
          %642 = vmatprep.subr.bf16.mxu0 0
          %643 = vmatpush1.bf16.msra.mxu0 0
          %644 = vmatprep.subr.bf16.mxu0 0
          %645 = vmatpush1.bf16.msra.mxu0 0
          %646 = vmatprep.subr.bf16.mxu0 0
          %647 = vmatpush1.bf16.msra.mxu0 0
          %648 = vmatprep.subr.bf16.mxu0 0
          %649 = vmatpush1.bf16.msra.mxu0 0
          %650 = vmatprep.subr.bf16.mxu0 0
          %651 = vmatpush1.bf16.msra.mxu0 0
          %652 = vmatprep.subr.bf16.mxu0 0
          %653 = vmatpush1.bf16.msra.mxu0 0
          %654 = vmatprep.subr.bf16.mxu0 0
          %655 = vmatpush1.bf16.msra.mxu0 0
          %656 = vmatprep.subr.bf16.mxu0 0
          %657 = vmatpush1.bf16.msra.mxu0 0
          %658 = vmatprep.subr.bf16.mxu0 0
          %659 = vmatpush1.bf16.msra.mxu0 0
          %660 = vmatprep.subr.bf16.mxu0 0
          %661 = vmatpush1.bf16.msra.mxu0 0
          %662 = vmatprep.subr.bf16.mxu0 0
          %663 = vmatpush1.bf16.msra.mxu0 0
          %664 = vmatprep.subr.bf16.mxu0 0
          %665 = vmatpush1.bf16.msra.mxu0 0
          %666 = vmatprep.subr.bf16.mxu0 0
          %667 = vmatpush1.bf16.msra.mxu0 0
          %668 = vmatprep.mubr.bf16.mxu0 0
          %669 = vmatmul.mubr.bf16.gmra.mrb[0].mxu0 %v634
          %v670 = vpop.f32.mrb[0].mxu0
          %v671 = vadd.f32 %v618, %v670
          %v672 = vpop.f32.mrb[0].mxu0
          %v673 = vpop.f32.mrb[0].mxu0
          %v674 = vpop.f32.mrb[0].mxu0
          %675 = vdwg.mxu0
          %v676 = vmax.f32 %v671, 0.0
          %v677 = vpack.c.bf16 %v676, %v676
          %v678 = vld [vmem:[#allocation6] sm:$0xf]
          %v679 = vld [vmem:[#allocation6 + $0x4] sm:$0xf]
          %v680 = vld [vmem:[#allocation6 + $0x8] sm:$0xf]
          %v681 = vld [vmem:[#allocation6 + $0xc] sm:$0xf]
          %v682 = vld [vmem:[#allocation6 + $0x10] sm:$0xf]
          %v683 = vld [vmem:[#allocation6 + $0x14] sm:$0xf]
          %v684 = vld [vmem:[#allocation6 + $0x18] sm:$0xf]
          %v685 = vld [vmem:[#allocation6 + $0x1c] sm:$0xf]
          %v686 = vld [vmem:[%s7] sm:$0x1]
          %v688 = vlaneseq
          %v689 = vshrl.u32 %v688, 7
          %v690 = vsub.s32 0, %v689
          %v691 = vrot.slane %v686, %v690
          %v701 = vunpack.c.l.b16 %v678
          %v702 = vunpack.c.l.b16 %v679
          %v703 = vunpack.c.l.b16 %v680
          %v704 = vunpack.c.l.b16 %v681
          %v705 = vunpack.c.l.b16 %v682
          %v706 = vunpack.c.l.b16 %v683
          %v707 = vunpack.c.l.b16 %v684
          %v708 = vunpack.c.l.b16 %v685
          %v709 = vpack.c.b16 %v702, %v701
          %v710 = vpack.c.b16 %v704, %v703
          %v711 = vpack.c.b16 %v706, %v705
          %v712 = vpack.c.b16 %v708, %v707
          %vm717 = vcmask 523264
          %v719 = vsel %vm717, %v677, 0
          %721 = vmatprep.subr.bf16.mxu0 0
          %722 = vmatpush1.bf16.msra.mxu0 %v709
          %723 = vmatprep.subr.bf16.mxu0 0
          %724 = vmatpush1.bf16.msra.mxu0 %v710
          %725 = vmatprep.subr.bf16.mxu0 0
          %726 = vmatpush1.bf16.msra.mxu0 %v711
          %727 = vmatprep.subr.bf16.mxu0 0
          %728 = vmatpush1.bf16.msra.mxu0 %v712
          %729 = vmatprep.subr.bf16.mxu0 0
          %730 = vmatpush1.bf16.msra.mxu0 0
          %731 = vmatprep.subr.bf16.mxu0 0
          %732 = vmatpush1.bf16.msra.mxu0 0
          %733 = vmatprep.subr.bf16.mxu0 0
          %734 = vmatpush1.bf16.msra.mxu0 0
          %735 = vmatprep.subr.bf16.mxu0 0
          %736 = vmatpush1.bf16.msra.mxu0 0
          %737 = vmatprep.subr.bf16.mxu0 0
          %738 = vmatpush1.bf16.msra.mxu0 0
          %739 = vmatprep.subr.bf16.mxu0 0
          %740 = vmatpush1.bf16.msra.mxu0 0
          %741 = vmatprep.subr.bf16.mxu0 0
          %742 = vmatpush1.bf16.msra.mxu0 0
          %743 = vmatprep.subr.bf16.mxu0 0
          %744 = vmatpush1.bf16.msra.mxu0 0
          %745 = vmatprep.subr.bf16.mxu0 0
          %746 = vmatpush1.bf16.msra.mxu0 0
          %747 = vmatprep.subr.bf16.mxu0 0
          %748 = vmatpush1.bf16.msra.mxu0 0
          %749 = vmatprep.subr.bf16.mxu0 0
          %750 = vmatpush1.bf16.msra.mxu0 0
          %751 = vmatprep.subr.bf16.mxu0 0
          %752 = vmatpush1.bf16.msra.mxu0 0
          %753 = vmatprep.mubr.bf16.mxu0 0
          %754 = vmatmul.mubr.bf16.gmra.mrb[0].mxu0 %v719
          %v755 = vpop.f32.mrb[0].mxu0
          %v756 = vadd.f32 %v691, %v755
          %v757 = vpop.f32.mrb[0].mxu0
          %v758 = vpop.f32.mrb[0].mxu0
          %v759 = vpop.f32.mrb[0].mxu0
          %760 = vdwg.mxu0
          %v761 = vmul.f32 %v756, %v756
          %762 = vadd.xlane.f32.xlu0 %v761
          %v763 = vpop.xlane.xlu0 %762
          %v764 = vmax.f32 %v763, 1e-24
          %v765 = vrsqrt.pop %v764
          %v766 = vmul.f32 %v756, %v765
          %767 = vst [vmem:[#allocation10] sm:$0xff] %v766
          %v768 = vpack.c.bf16 %v766, %v766
          %v769 = vld [vmem:[#allocation8] sm:$0xf]
          %v770 = vld [vmem:[#allocation8 + $0x4] sm:$0xf]
          %v771 = vld [vmem:[#allocation8 + $0x8] sm:$0xf]
          %v772 = vld [vmem:[#allocation8 + $0xc] sm:$0xf]
          %v773 = vld [vmem:[#allocation8 + $0x10] sm:$0xf]
          %v774 = vld [vmem:[#allocation8 + $0x14] sm:$0xf]
          %v775 = vld [vmem:[#allocation8 + $0x18] sm:$0xf]
          %v776 = vld [vmem:[#allocation8 + $0x1c] sm:$0xf]
          %v777 = vld [vmem:[#allocation8 + $0x20] sm:$0xf]
          %v778 = vld [vmem:[#allocation8 + $0x24] sm:$0xf]
          %v779 = vld [vmem:[#allocation8 + $0x28] sm:$0xf]
          %v780 = vld [vmem:[#allocation8 + $0x2c] sm:$0xf]
          %v781 = vld [vmem:[#allocation8 + $0x30] sm:$0xf]
          %v782 = vld [vmem:[#allocation8 + $0x34] sm:$0xf]
          %v783 = vld [vmem:[#allocation8 + $0x38] sm:$0xf]
          %v784 = vld [vmem:[#allocation8 + $0x3c] sm:$0xf]
          %v801 = vunpack.c.l.b16 %v769
          %v802 = vunpack.c.l.b16 %v770
          %v803 = vunpack.c.l.b16 %v771
          %v804 = vunpack.c.l.b16 %v772
          %v805 = vunpack.c.l.b16 %v773
          %v806 = vunpack.c.l.b16 %v774
          %v807 = vunpack.c.l.b16 %v775
          %v808 = vunpack.c.l.b16 %v776
          %v809 = vunpack.c.l.b16 %v777
          %v810 = vunpack.c.l.b16 %v778
          %v811 = vunpack.c.l.b16 %v779
          %v812 = vunpack.c.l.b16 %v780
          %v813 = vunpack.c.l.b16 %v781
          %v814 = vunpack.c.l.b16 %v782
          %v815 = vunpack.c.l.b16 %v783
          %v816 = vunpack.c.l.b16 %v784
          %v817 = vpack.c.b16 %v802, %v801
          %v818 = vpack.c.b16 %v804, %v803
          %v819 = vpack.c.b16 %v806, %v805
          %v820 = vpack.c.b16 %v808, %v807
          %v821 = vpack.c.b16 %v810, %v809
          %v822 = vpack.c.b16 %v812, %v811
          %v823 = vpack.c.b16 %v814, %v813
          %v824 = vpack.c.b16 %v816, %v815
          %833 = vmatprep.subr.bf16.mxu0 0
          %834 = vmatpush1.bf16.msra.mxu0 %v817
          %835 = vmatprep.subr.bf16.mxu0 0
          %836 = vmatpush1.bf16.msra.mxu0 %v818
          %837 = vmatprep.subr.bf16.mxu0 0
          %838 = vmatpush1.bf16.msra.mxu0 %v819
          %839 = vmatprep.subr.bf16.mxu0 0
          %840 = vmatpush1.bf16.msra.mxu0 %v820
          %841 = vmatprep.subr.bf16.mxu0 0
          %842 = vmatpush1.bf16.msra.mxu0 %v821
          %843 = vmatprep.subr.bf16.mxu0 0
          %844 = vmatpush1.bf16.msra.mxu0 %v822
          %845 = vmatprep.subr.bf16.mxu0 0
          %846 = vmatpush1.bf16.msra.mxu0 %v823
          %847 = vmatprep.subr.bf16.mxu0 0
          %848 = vmatpush1.bf16.msra.mxu0 %v824
          %849 = vmatprep.subr.bf16.mxu0 0
          %850 = vmatpush1.bf16.msra.mxu0 0
          %851 = vmatprep.subr.bf16.mxu0 0
          %852 = vmatpush1.bf16.msra.mxu0 0
          %853 = vmatprep.subr.bf16.mxu0 0
          %854 = vmatpush1.bf16.msra.mxu0 0
          %855 = vmatprep.subr.bf16.mxu0 0
          %856 = vmatpush1.bf16.msra.mxu0 0
          %857 = vmatprep.subr.bf16.mxu0 0
          %858 = vmatpush1.bf16.msra.mxu0 0
          %859 = vmatprep.subr.bf16.mxu0 0
          %860 = vmatpush1.bf16.msra.mxu0 0
          %861 = vmatprep.subr.bf16.mxu0 0
          %862 = vmatpush1.bf16.msra.mxu0 0
          %863 = vmatprep.subr.bf16.mxu0 0
          %864 = vmatpush1.bf16.msra.mxu0 0
          %865 = vmatprep.mubr.bf16.mxu0 0
          %866 = vmatmul.mubr.bf16.gmra.mrb[0].mxu0 %v768
          %v867 = vpop.f32.mrb[0].mxu0
          %v868 = vadd.f32 0.0, %v867
          %v869 = vpop.f32.mrb[0].mxu0
          %v870 = vpop.f32.mrb[0].mxu0
          %v871 = vpop.f32.mrb[0].mxu0
          %872 = vdwg.mxu0
          %873 = vst [vmem:[#allocation9] sm:$0xff] %v868
        $region76: #{tpu_custom_call.1} parent=55 // pred_fallthru
          _
        // Predicated region
        $region77: #{tpu_custom_call.1} parent=55 // pred_check
          %p874 = pneg %p259
        $region78: #{tpu_custom_call.1} parent=55 // pred_check_branch
          %876 = sbr.rel (%p874) target = $region80
        $region79: #{tpu_custom_call.1} parent=55 // pred_region
          %s878 = ssub.s32 128, 128
          %879 = vsyncadd [#allocation5], %s878
          %s880 = smul.addr %s32, 128
          %s881 = scalar_lea.hbm %s9, %s880
          %s883 = sshll.u32 [#allocation9], 4
          %s884 = int_to_ptr.vmem [resolvable:$true] %s883
          %886 = dma.vmem_to_hbm [thread:$0]  %s884, 128, %s881, [#allocation5]
        $region80: #{tpu_custom_call.1} parent=55 // pred_fallthru
          _
        // Predicated region
        $region81: #{tpu_custom_call.1} parent=55 // pred_check
          %p887 = pneg %p285
        $region82: #{tpu_custom_call.1} parent=55 // pred_check_branch
          %889 = sbr.rel (%p887) target = $region84
        $region83: #{tpu_custom_call.1} parent=55 // pred_region
          %s891 = ssub.s32 128, 128
          %892 = vsyncadd [#allocation11], %s891
          %s893 = smul.addr %s32, 128
          %s894 = scalar_lea.hbm %s10, %s893
          %s896 = sshll.u32 [#allocation10], 4
          %s897 = int_to_ptr.vmem [resolvable:$true] %s896
          %899 = dma.vmem_to_hbm [thread:$0]  %s897, 128, %s894, [#allocation11]
        $region84: #{tpu_custom_call.1} parent=55 // pred_fallthru
          _
        // Predicated region
        $region85: #{tpu_custom_call.1} parent=55 // pred_check
          %p900 = pneg %p259
        $region86: #{tpu_custom_call.1} parent=55 // pred_check_branch
          %902 = sbr.rel (%p900) target = $region88
        $region87: #{tpu_custom_call.1} parent=55 // pred_region
          %903 = dma.done [#allocation5], 128
        $region88: #{tpu_custom_call.1} parent=55 // pred_fallthru
          _
        // Predicated region
        $region89: #{tpu_custom_call.1} parent=55 // pred_check
          %p904 = pneg %p285
        $region90: #{tpu_custom_call.1} parent=55 // pred_check_branch
          %906 = sbr.rel (%p904) target = $region92
        $region91: #{tpu_custom_call.1} parent=55 // pred_region
          %907 = dma.done [#allocation11], 128
        $region92: #{tpu_custom_call.1} parent=55 // pred_fallthru
          _
      $region56: #{tpu_custom_call.1} parent=5 // pred_fallthru
        _
      %p908 = scmp.le.s32.totalorder 2, %s23
      // Predicated region
      $region93: #{tpu_custom_call.1} parent=5 // pred_check
        %p909 = pneg %p908
      $region94: #{tpu_custom_call.1} parent=5 // pred_check_branch
        %911 = sbr.rel (%p909) target = $region96
      $region95: #{tpu_custom_call.1} parent=5 // pred_region
        %s912 = ssub.s32 %s23, 2
      $region96: #{tpu_custom_call.1} parent=5 // pred_fallthru
        _
    $region6: #{tpu_custom_call.1} parent=1 // loop_footer
      %s27 = sadd.s32 1, %s23
    $region7: #{tpu_custom_call.1} parent=1 // loop_footer_branch
      %22 = sbr.rel target = $region3
    $region8: #{tpu_custom_call.1} parent=1 // loop_exit
      _
    %913 = vsyncpa [#allocation4], 1
    %s914 = scalar_lea.sflag [#allocation4], 1
    %915 = vsyncpa %s914, 1
    %916 = vsyncpa [#allocation7], 1
    %917 = vsyncpa [#allocation5], 1
    %s918 = scalar_lea.sflag [#allocation5], 1
    %919 = vsyncpa %s918, 1
    %920 = vsyncpa [#allocation11], 1

</llo_original>
